<compile_context>
chip_gen: v6e
topology: v6e:2x2x1
jax: 0.10.0
libtpu: 0.0.40
codegen_flags: <defaults>
</compile_context>

<pallas_src>
import functools

import jax
import jax.numpy as jnp
from jax.experimental import pallas as pl
from jax.experimental.pallas import tpu as pltpu

HID1 = 256      # first hidden width
HID2 = 128      # second hidden width
NOUT = 3        # true output width
NOUT_PAD = 128  # lane-dense padded output width


def _round_up(n, m):
    return ((n + m - 1) // m) * m


def _vel_estimator_kernel(x_ref, w1_ref, b1_ref, w2_ref, b2_ref, w3_ref, b3_ref, o_ref):
    # Fused hot path: 3 MXU matmuls (bf16 operands, f32 accumulate) + bias adds + 2 ReLUs.
    x = x_ref[...]                                                              # (TB, Kp) bf16
    h1 = jnp.dot(x, w1_ref[...], preferred_element_type=jnp.float32) + b1_ref[...]
    h1 = jnp.maximum(h1, 0.0).astype(w2_ref.dtype)                              # (TB, 256) bf16
    h2 = jnp.dot(h1, w2_ref[...], preferred_element_type=jnp.float32) + b2_ref[...]
    h2 = jnp.maximum(h2, 0.0).astype(w3_ref.dtype)                              # (TB, 128) bf16
    out = jnp.dot(h2, w3_ref[...], preferred_element_type=jnp.float32) + b3_ref[...]
    o_ref[...] = out.astype(o_ref.dtype)                                        # (TB, 128) f32


def pack_params(params, num_input):
    """Pad / cast (in,out)-layout f32 params into the kernel layout.

    - w1 rows (K) zero-padded to a multiple of 128, cast to bf16.
    - w3/b3 columns zero-padded to NOUT_PAD (padding columns contribute exact zeros).
    - weights bf16, biases f32.
    """
    w1, b1, w2, b2, w3, b3 = params
    k_pad = _round_up(max(num_input, 1), 128)
    w1p = jnp.zeros((k_pad, HID1), jnp.bfloat16).at[:num_input, :].set(w1.astype(jnp.bfloat16))
    w3p = jnp.zeros((HID2, NOUT_PAD), jnp.bfloat16).at[:, :NOUT].set(w3.astype(jnp.bfloat16))
    b3p = jnp.zeros((1, NOUT_PAD), jnp.float32).at[:, :NOUT].set(b3.astype(jnp.float32))
    return (w1p, b1.astype(jnp.float32),
            w2.astype(jnp.bfloat16), b2.astype(jnp.float32),
            w3p, b3p)


@functools.partial(jax.jit, static_argnames=("tb_max",))
def vel_estimator_forward(x, packed_params, *, tb_max=256):
    """x: [B, num_input] float32 -> [B, 3] float32."""
    w1, b1, w2, b2, w3, b3 = packed_params
    B, K = x.shape
    k_pad = w1.shape[0]

    # Batch tile: multiple of 128 (MXU M dim), capped at tb_max; pad B to a tile multiple.
    tb = min(tb_max, _round_up(B, 128))
    b_pad = _round_up(B, tb)
    xp = jnp.zeros((b_pad, k_pad), jnp.bfloat16).at[:B, :K].set(x.astype(jnp.bfloat16))

    grid = (pl.cdiv(b_pad, tb),)
    flops = 2 * b_pad * (k_pad * HID1 + HID1 * HID2 + HID2 * NOUT_PAD)
    bytes_accessed = (xp.size * 2 + w1.size * 2 + w2.size * 2 + w3.size * 2
                      + b1.size * 4 + b2.size * 4 + b3.size * 4
                      + b_pad * NOUT_PAD * 4)

    out = pl.pallas_call(
        _vel_estimator_kernel,
        out_shape=jax.ShapeDtypeStruct((b_pad, NOUT_PAD), jnp.float32),
        grid=grid,
        in_specs=[
            pl.BlockSpec((tb, k_pad), lambda i: (i, 0)),      # x tile: streamed per grid step
            pl.BlockSpec((k_pad, HID1), lambda i: (0, 0)),    # w1: resident
            pl.BlockSpec((1, HID1), lambda i: (0, 0)),        # b1: resident
            pl.BlockSpec((HID1, HID2), lambda i: (0, 0)),     # w2: resident
            pl.BlockSpec((1, HID2), lambda i: (0, 0)),        # b2: resident
            pl.BlockSpec((HID2, NOUT_PAD), lambda i: (0, 0)), # w3 (lane-padded): resident
            pl.BlockSpec((1, NOUT_PAD), lambda i: (0, 0)),    # b3 (lane-padded): resident
        ],
        out_specs=pl.BlockSpec((tb, NOUT_PAD), lambda i: (i, 0)),
        compiler_params=pltpu.CompilerParams(
            dimension_semantics=("parallel",),  # shard batch tiles across TCs on v7x
        ),
        cost_estimate=pl.CostEstimate(
            flops=flops, transcendentals=0, bytes_accessed=bytes_accessed),
    )(xp, w1, b1, w2, b2, w3, b3)

    return out[:B, :NOUT]


def init_params(key, num_input):
    """Deterministic synthetic parameters matching nn.Linear init (stored as [in, out])."""
    k1, k2, k3 = jax.random.split(key, 3)

    def lin(k, fan_in, fan_out):
        bound = 1.0 / jnp.sqrt(jnp.float32(fan_in))
        kw, kb = jax.random.split(k)
        w = jax.random.uniform(kw, (fan_in, fan_out), jnp.float32, -bound, bound)
        b = jax.random.uniform(kb, (1, fan_out), jnp.float32, -bound, bound)
        return w, b

    w1, b1 = lin(k1, num_input, HID1)
    w2, b2 = lin(k2, HID1, HID2)
    w3, b3 = lin(k3, HID2, NOUT)
    return (w1, b1, w2, b2, w3, b3)


def _reference_forward(x, params):
    # Reference mirrors the kernel's mixed precision (bf16 operands, f32 accumulation/biases).
    w1, b1, w2, b2, w3, b3 = params
    bf = jnp.bfloat16
    h1 = jnp.dot(x.astype(bf), w1.astype(bf), preferred_element_type=jnp.float32) + b1
    h1 = jnp.maximum(h1, 0.0)
    h2 = jnp.dot(h1.astype(bf), w2.astype(bf), preferred_element_type=jnp.float32) + b2
    h2 = jnp.maximum(h2, 0.0)
    return jnp.dot(h2.astype(bf), w3.astype(bf), preferred_element_type=jnp.float32) + b3


if __name__ == "__main__":
    num_input = 48
    batch = 8

    key = jax.random.PRNGKey(0)
    kx, kp = jax.random.split(key)
    x = jax.random.normal(kx, (batch, num_input), jnp.float32)
    params = init_params(kp, num_input)
    packed = pack_params(params, num_input)

    out = vel_estimator_forward(x, packed)
    out = jax.block_until_ready(out)

    ref = _reference_forward(x, params)
    assert out.shape == (batch, NOUT)
    assert jnp.allclose(out, ref, atol=1e-2, rtol=1e-2), "mismatch vs reference"

    print("KERNEL_OK")
</pallas_src>

<mosaic_0001>
module attributes {stable_mosaic.version = 11 : i64} {
  func.func @_vel_estimator_kernel(%arg0: i32, %arg1: memref<128x128xbf16, #tpu.memory_space<vmem>>, %arg2: memref<128x256xbf16, #tpu.memory_space<vmem>>, %arg3: memref<1x256xf32, #tpu.memory_space<vmem>>, %arg4: memref<256x128xbf16, #tpu.memory_space<vmem>>, %arg5: memref<1x128xf32, #tpu.memory_space<vmem>>, %arg6: memref<128x128xbf16, #tpu.memory_space<vmem>>, %arg7: memref<1x128xf32, #tpu.memory_space<vmem>>, %arg8: memref<128x128xf32, #tpu.memory_space<vmem>>) attributes {dimension_semantics = [#tpu.dimension_semantics<parallel>], iteration_bounds = array<i64: 1>, scalar_prefetch = 0 : i64, scratch_operands = 0 : i64, tpu.core_type = #tpu.core_type<tc>, window_params = [{transform_indices = @transform_0, window_bounds = array<i64: 128, 128>}, {pipeline_mode = #tpu.pipeline_mode<synchronous>, transform_indices = @transform_1, window_bounds = array<i64: 128, 256>}, {pipeline_mode = #tpu.pipeline_mode<synchronous>, transform_indices = @transform_2, window_bounds = array<i64: 1, 256>}, {pipeline_mode = #tpu.pipeline_mode<synchronous>, transform_indices = @transform_3, window_bounds = array<i64: 256, 128>}, {pipeline_mode = #tpu.pipeline_mode<synchronous>, transform_indices = @transform_4, window_bounds = array<i64: 1, 128>}, {pipeline_mode = #tpu.pipeline_mode<synchronous>, transform_indices = @transform_5, window_bounds = array<i64: 128, 128>}, {pipeline_mode = #tpu.pipeline_mode<synchronous>, transform_indices = @transform_6, window_bounds = array<i64: 1, 128>}, {transform_indices = @transform_7, window_bounds = array<i64: 128, 128>}]} {
    %c0 = arith.constant 0 : index
    %c0_0 = arith.constant 0 : index
    %0 = vector.load %arg1[%c0, %c0_0] : memref<128x128xbf16, #tpu.memory_space<vmem>>, vector<128x128xbf16>
    %c0_1 = arith.constant 0 : index
    %c0_2 = arith.constant 0 : index
    %1 = vector.load %arg2[%c0_1, %c0_2] : memref<128x256xbf16, #tpu.memory_space<vmem>>, vector<128x256xbf16>
    %cst = arith.constant dense<0.000000e+00> : vector<128x256xf32>
    %2 = tpu.matmul %0, %1, %cst {dimension_numbers = #tpu.dot_dimension_numbers<[1], [0], [0], [1], [0, 0, 1, 1], [], []>} : vector<128x128xbf16>, vector<128x256xbf16>, vector<128x256xf32> -> vector<128x256xf32>
    %c0_3 = arith.constant 0 : index
    %c0_4 = arith.constant 0 : index
    %3 = vector.load %arg3[%c0_3, %c0_4] : memref<1x256xf32, #tpu.memory_space<vmem>>, vector<1x256xf32>
    %4 = vector.broadcast %3 : vector<1x256xf32> to vector<128x256xf32>
    %5 = arith.addf %2, %4 : vector<128x256xf32>
    %cst_5 = arith.constant 0.000000e+00 : f32
    %6 = vector.broadcast %cst_5 : f32 to vector<128x256xf32>
    %7 = arith.maximumf %5, %6 : vector<128x256xf32>
    %8 = arith.truncf %7 : vector<128x256xf32> to vector<128x256xbf16>
    %c0_6 = arith.constant 0 : index
    %c0_7 = arith.constant 0 : index
    %9 = vector.load %arg4[%c0_6, %c0_7] : memref<256x128xbf16, #tpu.memory_space<vmem>>, vector<256x128xbf16>
    %cst_8 = arith.constant dense<0.000000e+00> : vector<128x128xf32>
    %10 = tpu.matmul %8, %9, %cst_8 {dimension_numbers = #tpu.dot_dimension_numbers<[1], [0], [0], [1], [0, 0, 1, 1], [], []>} : vector<128x256xbf16>, vector<256x128xbf16>, vector<128x128xf32> -> vector<128x128xf32>
    %c0_9 = arith.constant 0 : index
    %c0_10 = arith.constant 0 : index
    %11 = vector.load %arg5[%c0_9, %c0_10] : memref<1x128xf32, #tpu.memory_space<vmem>>, vector<1x128xf32>
    %12 = vector.broadcast %11 : vector<1x128xf32> to vector<128x128xf32>
    %13 = arith.addf %10, %12 : vector<128x128xf32>
    %cst_11 = arith.constant 0.000000e+00 : f32
    %14 = vector.broadcast %cst_11 : f32 to vector<128x128xf32>
    %15 = arith.maximumf %13, %14 : vector<128x128xf32>
    %16 = arith.truncf %15 : vector<128x128xf32> to vector<128x128xbf16>
    %c0_12 = arith.constant 0 : index
    %c0_13 = arith.constant 0 : index
    %17 = vector.load %arg6[%c0_12, %c0_13] : memref<128x128xbf16, #tpu.memory_space<vmem>>, vector<128x128xbf16>
    %cst_14 = arith.constant dense<0.000000e+00> : vector<128x128xf32>
    %18 = tpu.matmul %16, %17, %cst_14 {dimension_numbers = #tpu.dot_dimension_numbers<[1], [0], [0], [1], [0, 0, 1, 1], [], []>} : vector<128x128xbf16>, vector<128x128xbf16>, vector<128x128xf32> -> vector<128x128xf32>
    %c0_15 = arith.constant 0 : index
    %c0_16 = arith.constant 0 : index
    %19 = vector.load %arg7[%c0_15, %c0_16] : memref<1x128xf32, #tpu.memory_space<vmem>>, vector<1x128xf32>
    %20 = vector.broadcast %19 : vector<1x128xf32> to vector<128x128xf32>
    %21 = arith.addf %18, %20 : vector<128x128xf32>
    %c0_17 = arith.constant 0 : index
    %c0_18 = arith.constant 0 : index
    %22 = vector.load %arg8[%c0_17, %c0_18] : memref<128x128xf32, #tpu.memory_space<vmem>>, vector<128x128xf32>
    tpu.vector_store %arg8[%c0_17, %c0_18], %21 {strides = array<i32>} : memref<128x128xf32, #tpu.memory_space<vmem>>, vector<128x128xf32>,
    return
  }
  func.func @transform_0(%arg0: i32) -> (i32, i32) {
    %c0_i32 = arith.constant 0 : i32
    %c0_i32_0 = arith.constant 0 : i32
    return %arg0, %c0_i32 : i32, i32
  }
  func.func @transform_1(%arg0: i32) -> (i32, i32) {
    %c0_i32 = arith.constant 0 : i32
    %c0_i32_0 = arith.constant 0 : i32
    %c0_i32_1 = arith.constant 0 : i32
    return %c0_i32, %c0_i32_0 : i32, i32
  }
  func.func @transform_2(%arg0: i32) -> (i32, i32) {
    %c0_i32 = arith.constant 0 : i32
    %c0_i32_0 = arith.constant 0 : i32
    %c0_i32_1 = arith.constant 0 : i32
    return %c0_i32, %c0_i32_0 : i32, i32
  }
  func.func @transform_3(%arg0: i32) -> (i32, i32) {
    %c0_i32 = arith.constant 0 : i32
    %c0_i32_0 = arith.constant 0 : i32
    %c0_i32_1 = arith.constant 0 : i32
    return %c0_i32, %c0_i32_0 : i32, i32
  }
  func.func @transform_4(%arg0: i32) -> (i32, i32) {
    %c0_i32 = arith.constant 0 : i32
    %c0_i32_0 = arith.constant 0 : i32
    %c0_i32_1 = arith.constant 0 : i32
    return %c0_i32, %c0_i32_0 : i32, i32
  }
  func.func @transform_5(%arg0: i32) -> (i32, i32) {
    %c0_i32 = arith.constant 0 : i32
    %c0_i32_0 = arith.constant 0 : i32
    %c0_i32_1 = arith.constant 0 : i32
    return %c0_i32, %c0_i32_0 : i32, i32
  }
  func.func @transform_6(%arg0: i32) -> (i32, i32) {
    %c0_i32 = arith.constant 0 : i32
    %c0_i32_0 = arith.constant 0 : i32
    %c0_i32_1 = arith.constant 0 : i32
    return %c0_i32, %c0_i32_0 : i32, i32
  }
  func.func @transform_7(%arg0: i32) -> (i32, i32) {
    %c0_i32 = arith.constant 0 : i32
    %c0_i32_0 = arith.constant 0 : i32
    return %arg0, %c0_i32 : i32, i32
  }
}

</mosaic_0001>

<llo_original>
// kernel: vel_estimator_forward.1
$region0: #{vel_estimator_forward.1}
  #allocation0 [shape = 'u32[]', space=smem, size = 0x4, offset = 0x4, fixed_abs, tag = 'smem constant byte address 0x4 - core index']
  #allocation1 [shape = 'u32[144,128]{1,0:T(1,128)}', space=vmem, size = 0x12000, scoped, tag = 'internal scratch']
  %s0 = inlined_call_operand.vmem [shape: bf16[128,128], index: 0, kind: input, shape index: {}]
  %s1 = inlined_call_operand.hbm [shape: bf16[128,256], index: 1, kind: input, shape index: {}]
  %s2 = inlined_call_operand.vmem [shape: f32[1,256], index: 2, kind: input, shape index: {}]
  %s3 = inlined_call_operand.hbm [shape: bf16[256,128], index: 3, kind: input, shape index: {}]
  %s4 = inlined_call_operand.vmem [shape: f32[1,128], index: 4, kind: input, shape index: {}]
  %s5 = inlined_call_operand.vmem [shape: bf16[128,128], index: 5, kind: input, shape index: {}]
  %s6 = inlined_call_operand.vmem [shape: f32[1,128], index: 6, kind: input, shape index: {}]
  %s7 = inlined_call_operand.vmem [shape: f32[128,128], index: 7, kind: output, shape index: {}]
  %s8 = sld [smem:[#allocation0]]
  $region46: #{vel_estimator_forward.1} parent=0
    _
  %s10 = ssub.s32 1, %s8
  %s11 = scalar_select 0, %s10, %s8
  $region1: #{vel_estimator_forward.1} parent=0
    #allocation2 [shape = 'u8[65536]{0}', space=vmem, size = 0x10000, scoped, tag = 'input window, operand 1, single buffered']
    #allocation3 [shape = 's32[1]{0}', space=sflag, size = 0x4, scoped, tag = 'scoped memory for vel_estimator_forward.1']
    #allocation4 [shape = 'u8[65536]{0}', space=vmem, size = 0x10000, scoped, tag = 'input window, operand 3, single buffered']
    #allocation5 [shape = 's32[1]{0}', space=sflag, size = 0x4, scoped, tag = 'scoped memory for vel_estimator_forward.1']
    %12 = vsyncpa [#allocation3], 0
    %13 = vsyncpa [#allocation5], 0
    // Predicated region
    $region2: #{vel_estimator_forward.1} parent=1 // pred_check
      _
    $region3: #{vel_estimator_forward.1} parent=1 // pred_check_branch
      %15 = sbr.rel (0) target = $region5
    $region4: #{vel_estimator_forward.1} parent=1 // pred_region
      _
    $region5: #{vel_estimator_forward.1} parent=1 // pred_fallthru
      _
    // Predicated region
    $region6: #{vel_estimator_forward.1} parent=1 // pred_check
      _
    $region7: #{vel_estimator_forward.1} parent=1 // pred_check_branch
      %17 = sbr.rel (0) target = $region9
    $region8: #{vel_estimator_forward.1} parent=1 // pred_region
      %s19 = ssub.s32 2048, 2048
      %20 = vsyncadd [#allocation3], %s19
      %s21 = sshll.u32 [#allocation2], 4
      %s22 = int_to_ptr.vmem [resolvable:$true] %s21
      %27 = dma.hbm_to_vmem [thread:$0]  %s1, 2048, %s22, [#allocation3], 128, 128, 8
    $region9: #{vel_estimator_forward.1} parent=1 // pred_fallthru
      _
    // Predicated region
    $region10: #{vel_estimator_forward.1} parent=1 // pred_check
      _
    $region11: #{vel_estimator_forward.1} parent=1 // pred_check_branch
      %29 = sbr.rel (0) target = $region13
    $region12: #{vel_estimator_forward.1} parent=1 // pred_region
      _
    $region13: #{vel_estimator_forward.1} parent=1 // pred_fallthru
      _
    // Predicated region
    $region14: #{vel_estimator_forward.1} parent=1 // pred_check
      _
    $region15: #{vel_estimator_forward.1} parent=1 // pred_check_branch
      %31 = sbr.rel (0) target = $region17
    $region16: #{vel_estimator_forward.1} parent=1 // pred_region
      %s33 = ssub.s32 2048, 2048
      %34 = vsyncadd [#allocation5], %s33
      %s35 = sshll.u32 [#allocation4], 4
      %s36 = int_to_ptr.vmem [resolvable:$true] %s35
      %41 = dma.hbm_to_vmem [thread:$0]  %s3, 2048, %s36, [#allocation5], 64, 64, 4
    $region17: #{vel_estimator_forward.1} parent=1 // pred_fallthru
      _
    // Predicated region
    $region18: #{vel_estimator_forward.1} parent=1 // pred_check
      _
    $region19: #{vel_estimator_forward.1} parent=1 // pred_check_branch
      %43 = sbr.rel (0) target = $region21
    $region20: #{vel_estimator_forward.1} parent=1 // pred_region
      _
    $region21: #{vel_estimator_forward.1} parent=1 // pred_fallthru
      _
    // Predicated region
    $region22: #{vel_estimator_forward.1} parent=1 // pred_check
      _
    $region23: #{vel_estimator_forward.1} parent=1 // pred_check_branch
      %45 = sbr.rel (0) target = $region25
    $region24: #{vel_estimator_forward.1} parent=1 // pred_region
      _
    $region25: #{vel_estimator_forward.1} parent=1 // pred_fallthru
      _
    // Predicated region
    $region26: #{vel_estimator_forward.1} parent=1 // pred_check
      _
    $region27: #{vel_estimator_forward.1} parent=1 // pred_check_branch
      %47 = sbr.rel (0) target = $region29
    $region28: #{vel_estimator_forward.1} parent=1 // pred_region
      _
    $region29: #{vel_estimator_forward.1} parent=1 // pred_fallthru
      _
    // Predicated region
    $region30: #{vel_estimator_forward.1} parent=1 // pred_check
      _
    $region31: #{vel_estimator_forward.1} parent=1 // pred_check_branch
      %49 = sbr.rel (0) target = $region33
    $region32: #{vel_estimator_forward.1} parent=1 // pred_region
      %50 = dma.done [#allocation3], 2048
    $region33: #{vel_estimator_forward.1} parent=1 // pred_fallthru
      _
    // Predicated region
    $region34: #{vel_estimator_forward.1} parent=1 // pred_check
      _
    $region35: #{vel_estimator_forward.1} parent=1 // pred_check_branch
      %52 = sbr.rel (0) target = $region37
    $region36: #{vel_estimator_forward.1} parent=1 // pred_region
      %53 = dma.done [#allocation5], 2048
    $region37: #{vel_estimator_forward.1} parent=1 // pred_fallthru
      _
    %v55 = vld [vmem:[%s0] sm:$0xf]
    %v56 = vld [vmem:[%s0 + $0x4] sm:$0xf]
    %v57 = vld [vmem:[%s0 + $0x8] sm:$0xf]
    %v58 = vld [vmem:[%s0 + $0xc] sm:$0xf]
    %v59 = vld [vmem:[%s0 + $0x10] sm:$0xf]
    %v60 = vld [vmem:[%s0 + $0x14] sm:$0xf]
    %v61 = vld [vmem:[%s0 + $0x18] sm:$0xf]
    %v62 = vld [vmem:[%s0 + $0x1c] sm:$0xf]
    %v63 = vld [vmem:[%s0 + $0x20] sm:$0xf]
    %v64 = vld [vmem:[%s0 + $0x24] sm:$0xf]
    %v65 = vld [vmem:[%s0 + $0x28] sm:$0xf]
    %v66 = vld [vmem:[%s0 + $0x2c] sm:$0xf]
    %v67 = vld [vmem:[%s0 + $0x30] sm:$0xf]
    %v68 = vld [vmem:[%s0 + $0x34] sm:$0xf]
    %v69 = vld [vmem:[%s0 + $0x38] sm:$0xf]
    %v70 = vld [vmem:[%s0 + $0x3c] sm:$0xf]
    %v71 = vld [vmem:[#allocation2] sm:$0xff]
    %v72 = vld [vmem:[#allocation2 + $0x8] sm:$0xff]
    %v73 = vld [vmem:[#allocation2 + $0x10] sm:$0xff]
    %v74 = vld [vmem:[#allocation2 + $0x18] sm:$0xff]
    %v75 = vld [vmem:[#allocation2 + $0x20] sm:$0xff]
    %v76 = vld [vmem:[#allocation2 + $0x28] sm:$0xff]
    %v77 = vld [vmem:[#allocation2 + $0x30] sm:$0xff]
    %v78 = vld [vmem:[#allocation2 + $0x38] sm:$0xff]
    %v79 = vld [vmem:[#allocation2 + $0x40] sm:$0xff]
    %v80 = vld [vmem:[#allocation2 + $0x48] sm:$0xff]
    %v81 = vld [vmem:[#allocation2 + $0x50] sm:$0xff]
    %v82 = vld [vmem:[#allocation2 + $0x58] sm:$0xff]
    %v83 = vld [vmem:[#allocation2 + $0x60] sm:$0xff]
    %v84 = vld [vmem:[#allocation2 + $0x68] sm:$0xff]
    %v85 = vld [vmem:[#allocation2 + $0x70] sm:$0xff]
    %v86 = vld [vmem:[#allocation2 + $0x78] sm:$0xff]
    %v87 = vld [vmem:[%s2] sm:$0x3]
    %v89 = vlaneseq
    %v90 = vshrl.u32 %v89, 7
    %v91 = vsub.s32 0, %v90
    %v92 = vrot.slane %v87, %v91
    %v93 = vlaneseq
    %v94 = vshrl.u32 %v93, 7
    %v95 = vsub.s32 1, %v94
    %v96 = vrot.slane %v87, %v95
    %v115 = vunpack.c.l.b16 %v55
    %v116 = vunpack.c.l.b16 %v56
    %v117 = vunpack.c.l.b16 %v57
    %v118 = vunpack.c.l.b16 %v58
    %v119 = vunpack.c.l.b16 %v59
    %v120 = vunpack.c.l.b16 %v60
    %v121 = vunpack.c.l.b16 %v61
    %v122 = vunpack.c.l.b16 %v62
    %v123 = vunpack.c.l.b16 %v63
    %v124 = vunpack.c.l.b16 %v64
    %v125 = vunpack.c.l.b16 %v65
    %v126 = vunpack.c.l.b16 %v66
    %v127 = vunpack.c.l.b16 %v67
    %v128 = vunpack.c.l.b16 %v68
    %v129 = vunpack.c.l.b16 %v69
    %v130 = vunpack.c.l.b16 %v70
    %v131 = vpack.c.b16 %v116, %v115
    %v132 = vpack.c.b16 %v118, %v117
    %v133 = vpack.c.b16 %v120, %v119
    %v134 = vpack.c.b16 %v122, %v121
    %v135 = vpack.c.b16 %v124, %v123
    %v136 = vpack.c.b16 %v126, %v125
    %v137 = vpack.c.b16 %v128, %v127
    %v138 = vpack.c.b16 %v130, %v129
    %v163 = vunpack.c.l.b16 %v71
    %v164 = vunpack.c.h.b16 %v71
    %v165 = vunpack.c.l.b16 %v72
    %v166 = vunpack.c.h.b16 %v72
    %v167 = vunpack.c.l.b16 %v73
    %v168 = vunpack.c.h.b16 %v73
    %v169 = vunpack.c.l.b16 %v74
    %v170 = vunpack.c.h.b16 %v74
    %v171 = vunpack.c.l.b16 %v75
    %v172 = vunpack.c.h.b16 %v75
    %v173 = vunpack.c.l.b16 %v76
    %v174 = vunpack.c.h.b16 %v76
    %v175 = vunpack.c.l.b16 %v77
    %v176 = vunpack.c.h.b16 %v77
    %v177 = vunpack.c.l.b16 %v78
    %v178 = vunpack.c.h.b16 %v78
    %v179 = vunpack.c.l.b16 %v79
    %v180 = vunpack.c.h.b16 %v79
    %v181 = vunpack.c.l.b16 %v80
    %v182 = vunpack.c.h.b16 %v80
    %v183 = vunpack.c.l.b16 %v81
    %v184 = vunpack.c.h.b16 %v81
    %v185 = vunpack.c.l.b16 %v82
    %v186 = vunpack.c.h.b16 %v82
    %v187 = vunpack.c.l.b16 %v83
    %v188 = vunpack.c.h.b16 %v83
    %v189 = vunpack.c.l.b16 %v84
    %v190 = vunpack.c.h.b16 %v84
    %v191 = vunpack.c.l.b16 %v85
    %v192 = vunpack.c.h.b16 %v85
    %v193 = vunpack.c.l.b16 %v86
    %v194 = vunpack.c.h.b16 %v86
    %v195 = vpack.c.b16 %v165, %v163
    %v196 = vpack.c.b16 %v166, %v164
    %v197 = vpack.c.b16 %v169, %v167
    %v198 = vpack.c.b16 %v170, %v168
    %v199 = vpack.c.b16 %v173, %v171
    %v200 = vpack.c.b16 %v174, %v172
    %v201 = vpack.c.b16 %v177, %v175
    %v202 = vpack.c.b16 %v178, %v176
    %v203 = vpack.c.b16 %v181, %v179
    %v204 = vpack.c.b16 %v182, %v180
    %v205 = vpack.c.b16 %v185, %v183
    %v206 = vpack.c.b16 %v186, %v184
    %v207 = vpack.c.b16 %v189, %v187
    %v208 = vpack.c.b16 %v190, %v188
    %v209 = vpack.c.b16 %v193, %v191
    %v210 = vpack.c.b16 %v194, %v192
    %227 = vmatprep.subr.bf16.mxu0 %v210
    %228 = vmatpush1.bf16.msra.mxu0 %v209
    %229 = vmatprep.subr.bf16.mxu0 %v208
    %230 = vmatpush1.bf16.msra.mxu0 %v207
    %231 = vmatprep.subr.bf16.mxu0 %v206
    %232 = vmatpush1.bf16.msra.mxu0 %v205
    %233 = vmatprep.subr.bf16.mxu0 %v204
    %234 = vmatpush1.bf16.msra.mxu0 %v203
    %235 = vmatprep.subr.bf16.mxu0 %v202
    %236 = vmatpush1.bf16.msra.mxu0 %v201
    %237 = vmatprep.subr.bf16.mxu0 %v200
    %238 = vmatpush1.bf16.msra.mxu0 %v199
    %239 = vmatprep.subr.bf16.mxu0 %v198
    %240 = vmatpush1.bf16.msra.mxu0 %v197
    %241 = vmatprep.subr.bf16.mxu0 %v196
    %242 = vmatpush1.bf16.msra.mxu0 %v195
    %243 = vmatprep.subr.bf16.mxu0 0
    %244 = vmatpush2.bf16.msra.mxu0 0
    %245 = vmatprep.subr.bf16.mxu0 0
    %246 = vmatpush2.bf16.msra.mxu0 0
    %247 = vmatprep.subr.bf16.mxu0 0
    %248 = vmatpush2.bf16.msra.mxu0 0
    %249 = vmatprep.subr.bf16.mxu0 0
    %250 = vmatpush2.bf16.msra.mxu0 0
    %251 = vmatprep.subr.bf16.mxu0 0
    %252 = vmatpush2.bf16.msra.mxu0 0
    %253 = vmatprep.subr.bf16.mxu0 0
    %254 = vmatpush2.bf16.msra.mxu0 0
    %255 = vmatprep.subr.bf16.mxu0 0
    %256 = vmatpush2.bf16.msra.mxu0 0
    %257 = vmatprep.subr.bf16.mxu0 0
    %258 = vmatpush2.bf16.msra.mxu0 0
    %259 = vmatprep.mubr.bf16.mxu0 0
    %260 = vmatmul.mubr.bf16.gmra.mxu0 %v131
    %v261 = vpop.f32.mrf.mxu0
    %v262 = vadd.f32 %v92, %v261
    %v263 = vpop.f32.mrf.mxu0
    %v264 = vadd.f32 %v96, %v263
    %v265 = vpop.f32.mrf.mxu0
    %v266 = vadd.f32 %v92, %v265
    %v267 = vpop.f32.mrf.mxu0
    %v268 = vadd.f32 %v96, %v267
    %269 = vmatprep.mubr.bf16.mxu0 0
    %270 = vmatmul.mubr.bf16.gmra.mxu0 %v132
    %v271 = vpop.f32.mrf.mxu0
    %v272 = vadd.f32 %v92, %v271
    %v273 = vpop.f32.mrf.mxu0
    %v274 = vadd.f32 %v96, %v273
    %v275 = vpop.f32.mrf.mxu0
    %v276 = vadd.f32 %v92, %v275
    %v277 = vpop.f32.mrf.mxu0
    %v278 = vadd.f32 %v96, %v277
    %279 = vmatprep.mubr.bf16.mxu0 0
    %280 = vmatmul.mubr.bf16.gmra.mxu0 %v133
    %v281 = vpop.f32.mrf.mxu0
    %v282 = vadd.f32 %v92, %v281
    %v283 = vpop.f32.mrf.mxu0
    %v284 = vadd.f32 %v96, %v283
    %v285 = vpop.f32.mrf.mxu0
    %v286 = vadd.f32 %v92, %v285
    %v287 = vpop.f32.mrf.mxu0
    %v288 = vadd.f32 %v96, %v287
    %289 = vmatprep.mubr.bf16.mxu0 0
    %290 = vmatmul.mubr.bf16.gmra.mxu0 %v134
    %v291 = vpop.f32.mrf.mxu0
    %v292 = vadd.f32 %v92, %v291
    %v293 = vpop.f32.mrf.mxu0
    %v294 = vadd.f32 %v96, %v293
    %v295 = vpop.f32.mrf.mxu0
    %v296 = vadd.f32 %v92, %v295
    %v297 = vpop.f32.mrf.mxu0
    %v298 = vadd.f32 %v96, %v297
    %299 = vmatprep.mubr.bf16.mxu0 0
    %300 = vmatmul.mubr.bf16.gmra.mxu0 %v135
    %v301 = vpop.f32.mrf.mxu0
    %v302 = vadd.f32 %v92, %v301
    %v303 = vpop.f32.mrf.mxu0
    %v304 = vadd.f32 %v96, %v303
    %v305 = vpop.f32.mrf.mxu0
    %v306 = vadd.f32 %v92, %v305
    %v307 = vpop.f32.mrf.mxu0
    %v308 = vadd.f32 %v96, %v307
    %309 = vmatprep.mubr.bf16.mxu0 0
    %310 = vmatmul.mubr.bf16.gmra.mxu0 %v136
    %v311 = vpop.f32.mrf.mxu0
    %v312 = vadd.f32 %v92, %v311
    %v313 = vpop.f32.mrf.mxu0
    %v314 = vadd.f32 %v96, %v313
    %v315 = vpop.f32.mrf.mxu0
    %v316 = vadd.f32 %v92, %v315
    %v317 = vpop.f32.mrf.mxu0
    %v318 = vadd.f32 %v96, %v317
    %319 = vmatprep.mubr.bf16.mxu0 0
    %320 = vmatmul.mubr.bf16.gmra.mxu0 %v137
    %v321 = vpop.f32.mrf.mxu0
    %v322 = vadd.f32 %v92, %v321
    %v323 = vpop.f32.mrf.mxu0
    %v324 = vadd.f32 %v96, %v323
    %v325 = vpop.f32.mrf.mxu0
    %v326 = vadd.f32 %v92, %v325
    %v327 = vpop.f32.mrf.mxu0
    %v328 = vadd.f32 %v96, %v327
    %329 = vmatprep.mubr.bf16.mxu0 0
    %330 = vmatmul.mubr.bf16.gmra.mxu0 %v138
    %v331 = vpop.f32.mrf.mxu0
    %v332 = vadd.f32 %v92, %v331
    %v333 = vpop.f32.mrf.mxu0
    %v334 = vadd.f32 %v96, %v333
    %v335 = vpop.f32.mrf.mxu0
    %v336 = vadd.f32 %v92, %v335
    %v337 = vpop.f32.mrf.mxu0
    %v338 = vadd.f32 %v96, %v337
    %339 = vdwg.mxu0
    %v340 = vmax.f32 %v262, 0.0
    %v341 = vmax.f32 %v264, 0.0
    %v342 = vmax.f32 %v266, 0.0
    %v343 = vmax.f32 %v268, 0.0
    %v344 = vmax.f32 %v272, 0.0
    %v345 = vmax.f32 %v274, 0.0
    %v346 = vmax.f32 %v276, 0.0
    %v347 = vmax.f32 %v278, 0.0
    %v348 = vmax.f32 %v282, 0.0
    %v349 = vmax.f32 %v284, 0.0
    %v350 = vmax.f32 %v286, 0.0
    %v351 = vmax.f32 %v288, 0.0
    %v352 = vmax.f32 %v292, 0.0
    %v353 = vmax.f32 %v294, 0.0
    %v354 = vmax.f32 %v296, 0.0
    %v355 = vmax.f32 %v298, 0.0
    %v356 = vmax.f32 %v302, 0.0
    %v357 = vmax.f32 %v304, 0.0
    %v358 = vmax.f32 %v306, 0.0
    %v359 = vmax.f32 %v308, 0.0
    %v360 = vmax.f32 %v312, 0.0
    %v361 = vmax.f32 %v314, 0.0
    %v362 = vmax.f32 %v316, 0.0
    %v363 = vmax.f32 %v318, 0.0
    %v364 = vmax.f32 %v322, 0.0
    %v365 = vmax.f32 %v324, 0.0
    %v366 = vmax.f32 %v326, 0.0
    %v367 = vmax.f32 %v328, 0.0
    %v368 = vmax.f32 %v332, 0.0
    %v369 = vmax.f32 %v334, 0.0
    %v370 = vmax.f32 %v336, 0.0
    %v371 = vmax.f32 %v338, 0.0
    %v372 = vpack.c.bf16 %v342, %v340
    %v373 = vpack.c.bf16 %v343, %v341
    %v374 = vpack.c.bf16 %v346, %v344
    %v375 = vpack.c.bf16 %v347, %v345
    %v376 = vpack.c.bf16 %v350, %v348
    %v377 = vpack.c.bf16 %v351, %v349
    %v378 = vpack.c.bf16 %v354, %v352
    %v379 = vpack.c.bf16 %v355, %v353
    %v380 = vpack.c.bf16 %v358, %v356
    %v381 = vpack.c.bf16 %v359, %v357
    %v382 = vpack.c.bf16 %v362, %v360
    %v383 = vpack.c.bf16 %v363, %v361
    %v384 = vpack.c.bf16 %v366, %v364
    %v385 = vpack.c.bf16 %v367, %v365
    %v386 = vpack.c.bf16 %v370, %v368
    %v387 = vpack.c.bf16 %v371, %v369
    %v388 = vld [vmem:[#allocation4] sm:$0xf]
    %v389 = vld [vmem:[#allocation4 + $0x4] sm:$0xf]
    %v390 = vld [vmem:[#allocation4 + $0x8] sm:$0xf]
    %v391 = vld [vmem:[#allocation4 + $0xc] sm:$0xf]
    %v392 = vld [vmem:[#allocation4 + $0x10] sm:$0xf]
    %v393 = vld [vmem:[#allocation4 + $0x14] sm:$0xf]
    %v394 = vld [vmem:[#allocation4 + $0x18] sm:$0xf]
    %v395 = vld [vmem:[#allocation4 + $0x1c] sm:$0xf]
    %v396 = vld [vmem:[#allocation4 + $0x20] sm:$0xf]
    %v397 = vld [vmem:[#allocation4 + $0x24] sm:$0xf]
    %v398 = vld [vmem:[#allocation4 + $0x28] sm:$0xf]
    %v399 = vld [vmem:[#allocation4 + $0x2c] sm:$0xf]
    %v400 = vld [vmem:[#allocation4 + $0x30] sm:$0xf]
    %v401 = vld [vmem:[#allocation4 + $0x34] sm:$0xf]
    %v402 = vld [vmem:[#allocation4 + $0x38] sm:$0xf]
    %v403 = vld [vmem:[#allocation4 + $0x3c] sm:$0xf]
    %v404 = vld [vmem:[#allocation4 + $0x40] sm:$0xf]
    %v405 = vld [vmem:[#allocation4 + $0x44] sm:$0xf]
    %v406 = vld [vmem:[#allocation4 + $0x48] sm:$0xf]
    %v407 = vld [vmem:[#allocation4 + $0x4c] sm:$0xf]
    %v408 = vld [vmem:[#allocation4 + $0x50] sm:$0xf]
    %v409 = vld [vmem:[#allocation4 + $0x54] sm:$0xf]
    %v410 = vld [vmem:[#allocation4 + $0x58] sm:$0xf]
    %v411 = vld [vmem:[#allocation4 + $0x5c] sm:$0xf]
    %v412 = vld [vmem:[#allocation4 + $0x60] sm:$0xf]
    %v413 = vld [vmem:[#allocation4 + $0x64] sm:$0xf]
    %v414 = vld [vmem:[#allocation4 + $0x68] sm:$0xf]
    %v415 = vld [vmem:[#allocation4 + $0x6c] sm:$0xf]
    %v416 = vld [vmem:[#allocation4 + $0x70] sm:$0xf]
    %v417 = vld [vmem:[#allocation4 + $0x74] sm:$0xf]
    %v418 = vld [vmem:[#allocation4 + $0x78] sm:$0xf]
    %v419 = vld [vmem:[#allocation4 + $0x7c] sm:$0xf]
    %v420 = vld [vmem:[%s4] sm:$0x1]
    %v422 = vlaneseq
    %v423 = vshrl.u32 %v422, 7
    %v424 = vsub.s32 0, %v423
    %v425 = vrot.slane %v420, %v424
    %v459 = vunpack.c.l.b16 %v388
    %v460 = vunpack.c.l.b16 %v389
    %v461 = vunpack.c.l.b16 %v390
    %v462 = vunpack.c.l.b16 %v391
    %v463 = vunpack.c.l.b16 %v392
    %v464 = vunpack.c.l.b16 %v393
    %v465 = vunpack.c.l.b16 %v394
    %v466 = vunpack.c.l.b16 %v395
    %v467 = vunpack.c.l.b16 %v396
    %v468 = vunpack.c.l.b16 %v397
    %v469 = vunpack.c.l.b16 %v398
    %v470 = vunpack.c.l.b16 %v399
    %v471 = vunpack.c.l.b16 %v400
    %v472 = vunpack.c.l.b16 %v401
    %v473 = vunpack.c.l.b16 %v402
    %v474 = vunpack.c.l.b16 %v403
    %v475 = vunpack.c.l.b16 %v404
    %v476 = vunpack.c.l.b16 %v405
    %v477 = vunpack.c.l.b16 %v406
    %v478 = vunpack.c.l.b16 %v407
    %v479 = vunpack.c.l.b16 %v408
    %v480 = vunpack.c.l.b16 %v409
    %v481 = vunpack.c.l.b16 %v410
    %v482 = vunpack.c.l.b16 %v411
    %v483 = vunpack.c.l.b16 %v412
    %v484 = vunpack.c.l.b16 %v413
    %v485 = vunpack.c.l.b16 %v414
    %v486 = vunpack.c.l.b16 %v415
    %v487 = vunpack.c.l.b16 %v416
    %v488 = vunpack.c.l.b16 %v417
    %v489 = vunpack.c.l.b16 %v418
    %v490 = vunpack.c.l.b16 %v419
    %v491 = vpack.c.b16 %v460, %v459
    %v492 = vpack.c.b16 %v462, %v461
    %v493 = vpack.c.b16 %v464, %v463
    %v494 = vpack.c.b16 %v466, %v465
    %v495 = vpack.c.b16 %v468, %v467
    %v496 = vpack.c.b16 %v470, %v469
    %v497 = vpack.c.b16 %v472, %v471
    %v498 = vpack.c.b16 %v474, %v473
    %v499 = vpack.c.b16 %v476, %v475
    %v500 = vpack.c.b16 %v478, %v477
    %v501 = vpack.c.b16 %v480, %v479
    %v502 = vpack.c.b16 %v482, %v481
    %v503 = vpack.c.b16 %v484, %v483
    %v504 = vpack.c.b16 %v486, %v485
    %v505 = vpack.c.b16 %v488, %v487
    %v506 = vpack.c.b16 %v490, %v489
    %523 = vmatprep.subr.bf16.mxu0 0
    %524 = vmatpush1.bf16.msra.mxu0 %v498
    %525 = vmatprep.subr.bf16.mxu0 0
    %526 = vmatpush1.bf16.msra.mxu0 %v497
    %527 = vmatprep.subr.bf16.mxu0 0
    %528 = vmatpush1.bf16.msra.mxu0 %v496
    %529 = vmatprep.subr.bf16.mxu0 0
    %530 = vmatpush1.bf16.msra.mxu0 %v495
    %531 = vmatprep.subr.bf16.mxu0 0
    %532 = vmatpush1.bf16.msra.mxu0 %v494
    %533 = vmatprep.subr.bf16.mxu0 0
    %534 = vmatpush1.bf16.msra.mxu0 %v493
    %535 = vmatprep.subr.bf16.mxu0 0
    %536 = vmatpush1.bf16.msra.mxu0 %v492
    %537 = vmatprep.subr.bf16.mxu0 0
    %538 = vmatpush1.bf16.msra.mxu0 %v491
    %539 = vmatprep.subr.bf16.mxu0 0
    %540 = vmatpush2.bf16.msra.mxu0 %v506
    %541 = vmatprep.subr.bf16.mxu0 0
    %542 = vmatpush2.bf16.msra.mxu0 %v505
    %543 = vmatprep.subr.bf16.mxu0 0
    %544 = vmatpush2.bf16.msra.mxu0 %v504
    %545 = vmatprep.subr.bf16.mxu0 0
    %546 = vmatpush2.bf16.msra.mxu0 %v503
    %547 = vmatprep.subr.bf16.mxu0 0
    %548 = vmatpush2.bf16.msra.mxu0 %v502
    %549 = vmatprep.subr.bf16.mxu0 0
    %550 = vmatpush2.bf16.msra.mxu0 %v501
    %551 = vmatprep.subr.bf16.mxu0 0
    %552 = vmatpush2.bf16.msra.mxu0 %v500
    %553 = vmatprep.subr.bf16.mxu0 0
    %554 = vmatpush2.bf16.msra.mxu0 %v499
    %555 = vmatprep.mubr.bf16.mxu0 %v373
    %556 = vmatmul.mubr.bf16.gmra.mxu0 %v372
    %v557 = vpop.f32.mrf.mxu0
    %v558 = vadd.f32 %v425, %v557
    %v559 = vpop.f32.mrf.mxu0
    %v560 = vpop.f32.mrf.mxu0
    %v561 = vadd.f32 %v425, %v560
    %v562 = vpop.f32.mrf.mxu0
    %563 = vmatprep.mubr.bf16.mxu0 %v375
    %564 = vmatmul.mubr.bf16.gmra.mxu0 %v374
    %v565 = vpop.f32.mrf.mxu0
    %v566 = vadd.f32 %v425, %v565
    %v567 = vpop.f32.mrf.mxu0
    %v568 = vpop.f32.mrf.mxu0
    %v569 = vadd.f32 %v425, %v568
    %v570 = vpop.f32.mrf.mxu0
    %571 = vmatprep.mubr.bf16.mxu0 %v377
    %572 = vmatmul.mubr.bf16.gmra.mxu0 %v376
    %v573 = vpop.f32.mrf.mxu0
    %v574 = vadd.f32 %v425, %v573
    %v575 = vpop.f32.mrf.mxu0
    %v576 = vpop.f32.mrf.mxu0
    %v577 = vadd.f32 %v425, %v576
    %v578 = vpop.f32.mrf.mxu0
    %579 = vmatprep.mubr.bf16.mxu0 %v379
    %580 = vmatmul.mubr.bf16.gmra.mxu0 %v378
    %v581 = vpop.f32.mrf.mxu0
    %v582 = vadd.f32 %v425, %v581
    %v583 = vpop.f32.mrf.mxu0
    %v584 = vpop.f32.mrf.mxu0
    %v585 = vadd.f32 %v425, %v584
    %v586 = vpop.f32.mrf.mxu0
    %587 = vmatprep.mubr.bf16.mxu0 %v381
    %588 = vmatmul.mubr.bf16.gmra.mxu0 %v380
    %v589 = vpop.f32.mrf.mxu0
    %v590 = vadd.f32 %v425, %v589
    %v591 = vpop.f32.mrf.mxu0
    %v592 = vpop.f32.mrf.mxu0
    %v593 = vadd.f32 %v425, %v592
    %v594 = vpop.f32.mrf.mxu0
    %595 = vmatprep.mubr.bf16.mxu0 %v383
    %596 = vmatmul.mubr.bf16.gmra.mxu0 %v382
    %v597 = vpop.f32.mrf.mxu0
    %v598 = vadd.f32 %v425, %v597
    %v599 = vpop.f32.mrf.mxu0
    %v600 = vpop.f32.mrf.mxu0
    %v601 = vadd.f32 %v425, %v600
    %v602 = vpop.f32.mrf.mxu0
    %603 = vmatprep.mubr.bf16.mxu0 %v385
    %604 = vmatmul.mubr.bf16.gmra.mxu0 %v384
    %v605 = vpop.f32.mrf.mxu0
    %v606 = vadd.f32 %v425, %v605
    %v607 = vpop.f32.mrf.mxu0
    %v608 = vpop.f32.mrf.mxu0
    %v609 = vadd.f32 %v425, %v608
    %v610 = vpop.f32.mrf.mxu0
    %611 = vmatprep.mubr.bf16.mxu0 %v387
    %612 = vmatmul.mubr.bf16.gmra.mxu0 %v386
    %v613 = vpop.f32.mrf.mxu0
    %v614 = vadd.f32 %v425, %v613
    %v615 = vpop.f32.mrf.mxu0
    %v616 = vpop.f32.mrf.mxu0
    %v617 = vadd.f32 %v425, %v616
    %v618 = vpop.f32.mrf.mxu0
    %619 = vdwg.mxu0
    %v620 = vmax.f32 %v558, 0.0
    %v621 = vmax.f32 %v561, 0.0
    %v622 = vmax.f32 %v566, 0.0
    %v623 = vmax.f32 %v569, 0.0
    %v624 = vmax.f32 %v574, 0.0
    %v625 = vmax.f32 %v577, 0.0
    %v626 = vmax.f32 %v582, 0.0
    %v627 = vmax.f32 %v585, 0.0
    %v628 = vmax.f32 %v590, 0.0
    %v629 = vmax.f32 %v593, 0.0
    %v630 = vmax.f32 %v598, 0.0
    %v631 = vmax.f32 %v601, 0.0
    %v632 = vmax.f32 %v606, 0.0
    %v633 = vmax.f32 %v609, 0.0
    %v634 = vmax.f32 %v614, 0.0
    %v635 = vmax.f32 %v617, 0.0
    %v636 = vpack.c.bf16 %v621, %v620
    %v637 = vpack.c.bf16 %v623, %v622
    %v638 = vpack.c.bf16 %v625, %v624
    %v639 = vpack.c.bf16 %v627, %v626
    %v640 = vpack.c.bf16 %v629, %v628
    %v641 = vpack.c.bf16 %v631, %v630
    %v642 = vpack.c.bf16 %v633, %v632
    %v643 = vpack.c.bf16 %v635, %v634
    %v644 = vld [vmem:[%s5] sm:$0xf]
    %v645 = vld [vmem:[%s5 + $0x4] sm:$0xf]
    %v646 = vld [vmem:[%s5 + $0x8] sm:$0xf]
    %v647 = vld [vmem:[%s5 + $0xc] sm:$0xf]
    %v648 = vld [vmem:[%s5 + $0x10] sm:$0xf]
    %v649 = vld [vmem:[%s5 + $0x14] sm:$0xf]
    %v650 = vld [vmem:[%s5 + $0x18] sm:$0xf]
    %v651 = vld [vmem:[%s5 + $0x1c] sm:$0xf]
    %v652 = vld [vmem:[%s5 + $0x20] sm:$0xf]
    %v653 = vld [vmem:[%s5 + $0x24] sm:$0xf]
    %v654 = vld [vmem:[%s5 + $0x28] sm:$0xf]
    %v655 = vld [vmem:[%s5 + $0x2c] sm:$0xf]
    %v656 = vld [vmem:[%s5 + $0x30] sm:$0xf]
    %v657 = vld [vmem:[%s5 + $0x34] sm:$0xf]
    %v658 = vld [vmem:[%s5 + $0x38] sm:$0xf]
    %v659 = vld [vmem:[%s5 + $0x3c] sm:$0xf]
    %v660 = vld [vmem:[%s6] sm:$0x1]
    %v662 = vlaneseq
    %v663 = vshrl.u32 %v662, 7
    %v664 = vsub.s32 0, %v663
    %v665 = vrot.slane %v660, %v664
    %v683 = vunpack.c.l.b16 %v644
    %v684 = vunpack.c.l.b16 %v645
    %v685 = vunpack.c.l.b16 %v646
    %v686 = vunpack.c.l.b16 %v647
    %v687 = vunpack.c.l.b16 %v648
    %v688 = vunpack.c.l.b16 %v649
    %v689 = vunpack.c.l.b16 %v650
    %v690 = vunpack.c.l.b16 %v651
    %v691 = vunpack.c.l.b16 %v652
    %v692 = vunpack.c.l.b16 %v653
    %v693 = vunpack.c.l.b16 %v654
    %v694 = vunpack.c.l.b16 %v655
    %v695 = vunpack.c.l.b16 %v656
    %v696 = vunpack.c.l.b16 %v657
    %v697 = vunpack.c.l.b16 %v658
    %v698 = vunpack.c.l.b16 %v659
    %v699 = vpack.c.b16 %v684, %v683
    %v700 = vpack.c.b16 %v686, %v685
    %v701 = vpack.c.b16 %v688, %v687
    %v702 = vpack.c.b16 %v690, %v689
    %v703 = vpack.c.b16 %v692, %v691
    %v704 = vpack.c.b16 %v694, %v693
    %v705 = vpack.c.b16 %v696, %v695
    %v706 = vpack.c.b16 %v698, %v697
    %715 = vmatprep.subr.bf16.mxu0 0
    %716 = vmatpush1.bf16.msra.mxu0 %v706
    %717 = vmatprep.subr.bf16.mxu0 0
    %718 = vmatpush1.bf16.msra.mxu0 %v705
    %719 = vmatprep.subr.bf16.mxu0 0
    %720 = vmatpush1.bf16.msra.mxu0 %v704
    %721 = vmatprep.subr.bf16.mxu0 0
    %722 = vmatpush1.bf16.msra.mxu0 %v703
    %723 = vmatprep.subr.bf16.mxu0 0
    %724 = vmatpush1.bf16.msra.mxu0 %v702
    %725 = vmatprep.subr.bf16.mxu0 0
    %726 = vmatpush1.bf16.msra.mxu0 %v701
    %727 = vmatprep.subr.bf16.mxu0 0
    %728 = vmatpush1.bf16.msra.mxu0 %v700
    %729 = vmatprep.subr.bf16.mxu0 0
    %730 = vmatpush1.bf16.msra.mxu0 %v699
    %731 = vmatprep.subr.bf16.mxu0 0
    %732 = vmatpush2.bf16.msra.mxu0 0
    %733 = vmatprep.subr.bf16.mxu0 0
    %734 = vmatpush2.bf16.msra.mxu0 0
    %735 = vmatprep.subr.bf16.mxu0 0
    %736 = vmatpush2.bf16.msra.mxu0 0
    %737 = vmatprep.subr.bf16.mxu0 0
    %738 = vmatpush2.bf16.msra.mxu0 0
    %739 = vmatprep.subr.bf16.mxu0 0
    %740 = vmatpush2.bf16.msra.mxu0 0
    %741 = vmatprep.subr.bf16.mxu0 0
    %742 = vmatpush2.bf16.msra.mxu0 0
    %743 = vmatprep.subr.bf16.mxu0 0
    %744 = vmatpush2.bf16.msra.mxu0 0
    %745 = vmatprep.subr.bf16.mxu0 0
    %746 = vmatpush2.bf16.msra.mxu0 0
    %747 = vmatprep.mubr.bf16.mxu0 0
    %748 = vmatmul.mubr.bf16.gmra.mxu0 %v636
    %v749 = vpop.f32.mrf.mxu0
    %v750 = vadd.f32 %v665, %v749
    %v751 = vpop.f32.mrf.mxu0
    %v752 = vpop.f32.mrf.mxu0
    %v753 = vadd.f32 %v665, %v752
    %v754 = vpop.f32.mrf.mxu0
    %755 = vmatprep.mubr.bf16.mxu0 0
    %756 = vmatmul.mubr.bf16.gmra.mxu0 %v637
    %v757 = vpop.f32.mrf.mxu0
    %v758 = vadd.f32 %v665, %v757
    %v759 = vpop.f32.mrf.mxu0
    %v760 = vpop.f32.mrf.mxu0
    %v761 = vadd.f32 %v665, %v760
    %v762 = vpop.f32.mrf.mxu0
    %763 = vmatprep.mubr.bf16.mxu0 0
    %764 = vmatmul.mubr.bf16.gmra.mxu0 %v638
    %v765 = vpop.f32.mrf.mxu0
    %v766 = vadd.f32 %v665, %v765
    %v767 = vpop.f32.mrf.mxu0
    %v768 = vpop.f32.mrf.mxu0
    %v769 = vadd.f32 %v665, %v768
    %v770 = vpop.f32.mrf.mxu0
    %771 = vmatprep.mubr.bf16.mxu0 0
    %772 = vmatmul.mubr.bf16.gmra.mxu0 %v639
    %v773 = vpop.f32.mrf.mxu0
    %v774 = vadd.f32 %v665, %v773
    %v775 = vpop.f32.mrf.mxu0
    %v776 = vpop.f32.mrf.mxu0
    %v777 = vadd.f32 %v665, %v776
    %v778 = vpop.f32.mrf.mxu0
    %779 = vmatprep.mubr.bf16.mxu0 0
    %780 = vmatmul.mubr.bf16.gmra.mxu0 %v640
    %v781 = vpop.f32.mrf.mxu0
    %v782 = vadd.f32 %v665, %v781
    %v783 = vpop.f32.mrf.mxu0
    %v784 = vpop.f32.mrf.mxu0
    %v785 = vadd.f32 %v665, %v784
    %v786 = vpop.f32.mrf.mxu0
    %787 = vmatprep.mubr.bf16.mxu0 0
    %788 = vmatmul.mubr.bf16.gmra.mxu0 %v641
    %v789 = vpop.f32.mrf.mxu0
    %v790 = vadd.f32 %v665, %v789
    %v791 = vpop.f32.mrf.mxu0
    %v792 = vpop.f32.mrf.mxu0
    %v793 = vadd.f32 %v665, %v792
    %v794 = vpop.f32.mrf.mxu0
    %795 = vmatprep.mubr.bf16.mxu0 0
    %796 = vmatmul.mubr.bf16.gmra.mxu0 %v642
    %v797 = vpop.f32.mrf.mxu0
    %v798 = vadd.f32 %v665, %v797
    %v799 = vpop.f32.mrf.mxu0
    %v800 = vpop.f32.mrf.mxu0
    %v801 = vadd.f32 %v665, %v800
    %v802 = vpop.f32.mrf.mxu0
    %803 = vmatprep.mubr.bf16.mxu0 0
    %804 = vmatmul.mubr.bf16.gmra.mxu0 %v643
    %v805 = vpop.f32.mrf.mxu0
    %v806 = vadd.f32 %v665, %v805
    %v807 = vpop.f32.mrf.mxu0
    %v808 = vpop.f32.mrf.mxu0
    %v809 = vadd.f32 %v665, %v808
    %v810 = vpop.f32.mrf.mxu0
    %811 = vdwg.mxu0
    %812 = vst [vmem:[%s7] sm:$0xff] %v750
    %813 = vst [vmem:[%s7 + $0x8] sm:$0xff] %v753
    %814 = vst [vmem:[%s7 + $0x10] sm:$0xff] %v758
    %815 = vst [vmem:[%s7 + $0x18] sm:$0xff] %v761
    %816 = vst [vmem:[%s7 + $0x20] sm:$0xff] %v766
    %817 = vst [vmem:[%s7 + $0x28] sm:$0xff] %v769
    %818 = vst [vmem:[%s7 + $0x30] sm:$0xff] %v774
    %819 = vst [vmem:[%s7 + $0x38] sm:$0xff] %v777
    %820 = vst [vmem:[%s7 + $0x40] sm:$0xff] %v782
    %821 = vst [vmem:[%s7 + $0x48] sm:$0xff] %v785
    %822 = vst [vmem:[%s7 + $0x50] sm:$0xff] %v790
    %823 = vst [vmem:[%s7 + $0x58] sm:$0xff] %v793
    %824 = vst [vmem:[%s7 + $0x60] sm:$0xff] %v798
    %825 = vst [vmem:[%s7 + $0x68] sm:$0xff] %v801
    %826 = vst [vmem:[%s7 + $0x70] sm:$0xff] %v806
    %827 = vst [vmem:[%s7 + $0x78] sm:$0xff] %v809
    // Predicated region
    $region38: #{vel_estimator_forward.1} parent=1 // pred_check
      _
    $region39: #{vel_estimator_forward.1} parent=1 // pred_check_branch
      %829 = sbr.rel (0) target = $region41
    $region40: #{vel_estimator_forward.1} parent=1 // pred_region
      _
    $region41: #{vel_estimator_forward.1} parent=1 // pred_fallthru
      _
    // Predicated region
    $region42: #{vel_estimator_forward.1} parent=1 // pred_check
      _
    $region43: #{vel_estimator_forward.1} parent=1 // pred_check_branch
      %831 = sbr.rel (0) target = $region45
    $region44: #{vel_estimator_forward.1} parent=1 // pred_region
      _
    $region45: #{vel_estimator_forward.1} parent=1 // pred_fallthru
      _
    %832 = vsyncpa [#allocation3], 1
    %833 = vsyncpa [#allocation5], 1

</llo_original>
